<compile_context>
chip_gen: v7x
topology: tpu7x:2x2x1
jax: 0.10.0
libtpu: 0.0.40
codegen_flags: <defaults>
</compile_context>

<pallas_src>
import functools

import jax
import jax.numpy as jnp
from jax.experimental import pallas as pl
from jax.experimental.pallas import tpu as pltpu


def _round_up(x, m):
    return ((x + m - 1) // m) * m


def _angle_resnet_kernel(
    s_ref, si_ref,
    w_in_ref, w_init_ref, b_in_ref,
    w11_ref, b11_ref, w12_ref, b12_ref,
    w21_ref, b21_ref, w22_ref, b22_ref,
    w_out_ref, b_out_ref,
    o_ref,
):
    # NOTE: every op below is row-independent, so garbage rows in a ragged last
    # block never leak into valid rows.  Do NOT add cross-row reductions here.
    compute_dtype = w_in_ref.dtype
    dot = functools.partial(jnp.dot, preferred_element_type=jnp.float32)

    def relu_cast(x):
        # ReLU commutes with the downcast: relu(bf16(x)) == bf16(relu(x)).
        return jnp.maximum(x, 0.0).astype(compute_dtype)

    # Input projections: two K=c_s MXU dots summed in f32 (no in-kernel concat).
    a = (dot(relu_cast(s_ref[...]), w_in_ref[...])
         + dot(relu_cast(si_ref[...]), w_init_ref[...])
         + b_in_ref[...])                                  # f32 residual stream

    # AngleResNetLayer 1: a = a + linear_2(relu(linear_1(relu(a))))
    h = dot(relu_cast(a), w11_ref[...]) + b11_ref[...]
    h = dot(relu_cast(h), w12_ref[...]) + b12_ref[...]
    a = a + h

    # AngleResNetLayer 2
    h = dot(relu_cast(a), w21_ref[...]) + b21_ref[...]
    h = dot(relu_cast(h), w22_ref[...]) + b22_ref[...]
    a = a + h

    # linear_out(relu(alpha)) -- output lane-padded to a multiple of 128.
    out = dot(relu_cast(a), w_out_ref[...]) + b_out_ref[...]
    o_ref[...] = out.astype(o_ref.dtype)


def prepare_params(params, *, n_torsion_angles=7, compute_dtype=jnp.bfloat16):
    """One-time weight packing: cast to the MXU dtype (f32 biases), fold the two
    input-projection biases, zero-pad linear_out to 128 output lanes.
    Call once and reuse the result across forward calls."""
    f32 = jnp.float32
    n_out = 2 * n_torsion_angles
    n_out_pad = _round_up(n_out, 128)
    w_out = jnp.pad(params["w_out"],
                    ((0, 0), (0, n_out_pad - n_out))).astype(compute_dtype)
    b_out = jnp.pad(params["b_out"],
                    ((0, 0), (0, n_out_pad - n_out))).astype(f32)
    return (
        params["w_in"].astype(compute_dtype),
        params["w_initial"].astype(compute_dtype),
        (params["b_in"] + params["b_initial"]).astype(f32),
        params["w_l1_1"].astype(compute_dtype), params["b_l1_1"].astype(f32),
        params["w_l1_2"].astype(compute_dtype), params["b_l1_2"].astype(f32),
        params["w_l2_1"].astype(compute_dtype), params["b_l2_1"].astype(f32),
        params["w_l2_2"].astype(compute_dtype), params["b_l2_2"].astype(f32),
        w_out, b_out,
    )


def angle_resnet_forward(s, s_initial, packed_params, *, n_torsion_angles=7,
                         tile_m=1024):
    """s, s_initial: (..., N_res, c_s). Returns (..., N_res, n_torsion, 2) f32."""
    assert s.shape == s_initial.shape
    *batch_dims, n_res, c_s = s.shape
    w_in = packed_params[0]
    compute_dtype = w_in.dtype
    assert w_in.shape[0] == c_s, (w_in.shape, c_s)
    c = w_in.shape[1]
    n_out = 2 * n_torsion_angles
    n_out_pad = packed_params[-1].shape[1]

    m_total = n_res
    for d in batch_dims:
        m_total *= d

    # bf16 row tiles halve input DMA traffic; the residual stream stays f32.
    s2 = s.reshape(m_total, c_s).astype(compute_dtype)
    si2 = s_initial.reshape(m_total, c_s).astype(compute_dtype)

    # Row-tile selection: biggest tile that covers the work (amortizes the
    # ~0.35us per-grid-step overhead on single-TC v5e/v6e).  Only split into
    # >= 2 grid steps when every slice stays >= 512 rows, so v7x's two
    # TensorCores each get a near-roofline slice at negligible cost elsewhere.
    tile_rows = _round_up(min(tile_m, _round_up(m_total, 8)), 8)
    if m_total >= 1024:
        tile_rows = min(tile_rows, max(512, _round_up(pl.cdiv(m_total, 2), 8)))
    grid_m = pl.cdiv(m_total, tile_rows)

    row_spec = pl.BlockSpec((tile_rows, c_s), lambda i: (i, 0))
    out_spec = pl.BlockSpec((tile_rows, n_out_pad), lambda i: (i, 0))
    # Constant index_map -> weights stay resident in VMEM across the grid.
    weight_specs = [pl.BlockSpec(w.shape, lambda i: (0, 0)) for w in packed_params]

    # Advisory cost estimate (kernel is HBM-bound at realistic shapes).
    w_bytes = sum(int(w.size) * w.dtype.itemsize for w in packed_params)
    in_itemsize = jnp.dtype(compute_dtype).itemsize
    flops = 2 * m_total * (2 * c_s * c + 4 * c * c + c * n_out_pad)
    bytes_accessed = (2 * m_total * c_s * in_itemsize
                      + m_total * n_out_pad * 4 + w_bytes)

    # Only raise the scoped-VMEM limit when a conservative estimate exceeds the
    # 32 MiB default; never request the full 64 MiB physical VMEM of a v7x TC.
    vmem_need = (
        2 * 2 * tile_rows * c_s * in_itemsize          # double-buffered row tiles
        + 2 * tile_rows * n_out_pad * 4                # double-buffered output tile
        + 2 * w_bytes                                  # resident weights (conservative)
        + 4 * tile_rows * max(c_s, c, n_out_pad) * 4   # live f32 intermediates
    )
    cp_kwargs = dict(dimension_semantics=("parallel",))
    if 2 * vmem_need > 32 * 1024 * 1024:
        cp_kwargs["vmem_limit_bytes"] = int(min(48 * 1024 * 1024, 2 * vmem_need))

    out = pl.pallas_call(
        _angle_resnet_kernel,
        out_shape=jax.ShapeDtypeStruct((m_total, n_out_pad), jnp.float32),
        grid_spec=pltpu.PrefetchScalarGridSpec(
            num_scalar_prefetch=0,
            grid=(grid_m,),
            in_specs=[row_spec, row_spec] + weight_specs,
            out_specs=out_spec,
        ),
        compiler_params=pltpu.CompilerParams(**cp_kwargs),
        cost_estimate=pl.CostEstimate(
            flops=flops, transcendentals=0, bytes_accessed=bytes_accessed),
    )(s2, si2, *packed_params)

    # TODO(synk): a fused downstream consumer could read the padded (M, 128)
    # buffer (or a bf16 output) directly and skip this extra slicing pass.
    out = out[:, :n_out]
    return out.reshape(*batch_dims, n_res, n_torsion_angles, 2)


def init_params(key, c_s, c, n_torsion_angles=7):
    """Deterministic synthetic parameters. Weights stored as (in, out)."""
    keys = jax.random.split(key, 14)

    def linear(kw, kb, fan_in, fan_out):
        # Uniform(-1/sqrt(fan_in), 1/sqrt(fan_in)), like nn.Linear default.
        bound = 1.0 / jnp.sqrt(jnp.float32(fan_in))
        w = jax.random.uniform(kw, (fan_in, fan_out), jnp.float32, -bound, bound)
        b = jax.random.uniform(kb, (1, fan_out), jnp.float32, -bound, bound)
        return w, b

    p = {}
    p["w_in"], p["b_in"] = linear(keys[0], keys[1], c_s, c)
    p["w_initial"], p["b_initial"] = linear(keys[2], keys[3], c_s, c)
    p["w_l1_1"], p["b_l1_1"] = linear(keys[4], keys[5], c, c)
    p["w_l1_2"], p["b_l1_2"] = linear(keys[6], keys[7], c, c)
    p["w_l2_1"], p["b_l2_1"] = linear(keys[8], keys[9], c, c)
    p["w_l2_2"], p["b_l2_2"] = linear(keys[10], keys[11], c, c)
    p["w_out"], p["b_out"] = linear(keys[12], keys[13], c, 2 * n_torsion_angles)
    return p


def _reference_forward(s, s_initial, params, n_torsion_angles=7):
    """Pure-JAX f32 reference mirroring the PyTorch module (HIGHEST precision)."""
    relu = lambda x: jnp.maximum(x, 0.0)
    mm = functools.partial(jnp.matmul, precision=jax.lax.Precision.HIGHEST)
    lin = lambda x, w, b: mm(x, w) + b
    a = lin(relu(s), params["w_in"], params["b_in"]) + lin(
        relu(s_initial), params["w_initial"], params["b_initial"]
    )
    for k in ("l1", "l2"):
        h = lin(relu(a), params[f"w_{k}_1"], params[f"b_{k}_1"])
        h = lin(relu(h), params[f"w_{k}_2"], params[f"b_{k}_2"])
        a = a + h
    out = lin(relu(a), params["w_out"], params["b_out"])
    return out.reshape(*out.shape[:-1], n_torsion_angles, 2)


if __name__ == "__main__":
    B, N_RES, C_S, C, N_TORSION = 2, 8, 32, 32, 7

    key = jax.random.PRNGKey(0)
    k_s, k_si, k_p = jax.random.split(key, 3)
    s = jax.random.normal(k_s, (B, N_RES, C_S), jnp.float32)
    s_initial = jax.random.normal(k_si, (B, N_RES, C_S), jnp.float32)
    params = init_params(k_p, C_S, C, N_TORSION)

    ref = _reference_forward(s, s_initial, params, n_torsion_angles=N_TORSION)

    # f32-compute structural check.  Tolerance covers any difference between
    # Mosaic's in-kernel f32 matmul passes and XLA's default/HIGHEST precision.
    packed_f32 = prepare_params(params, n_torsion_angles=N_TORSION,
                                compute_dtype=jnp.float32)
    alpha_f32 = jax.block_until_ready(
        angle_resnet_forward(s, s_initial, packed_f32, n_torsion_angles=N_TORSION))
    assert alpha_f32.shape == (B, N_RES, N_TORSION, 2), alpha_f32.shape
    err32 = float(jnp.max(jnp.abs(alpha_f32 - ref)))
    assert err32 < 2e-2, f"f32 path mismatch vs reference: max abs err {err32}"

    # Default bf16-MXU / f32-accumulate path (bf16 activations + weights).
    packed_bf16 = prepare_params(params, n_torsion_angles=N_TORSION)
    alpha = jax.block_until_ready(
        angle_resnet_forward(s, s_initial, packed_bf16, n_torsion_angles=N_TORSION))
    assert alpha.shape == (B, N_RES, N_TORSION, 2), alpha.shape
    err16 = float(jnp.max(jnp.abs(alpha - ref)))
    assert err16 < 6e-2, f"bf16 path mismatch vs reference: max abs err {err16}"

    print("KERNEL_OK")
</pallas_src>

<mosaic_0001>
module attributes {stable_mosaic.version = 11 : i64} {
  func.func @_angle_resnet_kernel(%arg0: i32, %arg1: memref<16x32xf32, #tpu.memory_space<vmem>>, %arg2: memref<16x32xf32, #tpu.memory_space<vmem>>, %arg3: memref<32x32xf32, #tpu.memory_space<vmem>>, %arg4: memref<32x32xf32, #tpu.memory_space<vmem>>, %arg5: memref<1x32xf32, #tpu.memory_space<vmem>>, %arg6: memref<32x32xf32, #tpu.memory_space<vmem>>, %arg7: memref<1x32xf32, #tpu.memory_space<vmem>>, %arg8: memref<32x32xf32, #tpu.memory_space<vmem>>, %arg9: memref<1x32xf32, #tpu.memory_space<vmem>>, %arg10: memref<32x32xf32, #tpu.memory_space<vmem>>, %arg11: memref<1x32xf32, #tpu.memory_space<vmem>>, %arg12: memref<32x32xf32, #tpu.memory_space<vmem>>, %arg13: memref<1x32xf32, #tpu.memory_space<vmem>>, %arg14: memref<32x128xf32, #tpu.memory_space<vmem>>, %arg15: memref<1x128xf32, #tpu.memory_space<vmem>>, %arg16: memref<16x128xf32, #tpu.memory_space<vmem>>) attributes {dimension_semantics = [#tpu.dimension_semantics<parallel>], iteration_bounds = array<i64: 1>, scalar_prefetch = 0 : i64, scratch_operands = 0 : i64, tpu.core_type = #tpu.core_type<tc>, window_params = [{transform_indices = @transform_0, window_bounds = array<i64: 16, 32>}, {transform_indices = @transform_1, window_bounds = array<i64: 16, 32>}, {pipeline_mode = #tpu.pipeline_mode<synchronous>, transform_indices = @transform_2, window_bounds = array<i64: 32, 32>}, {pipeline_mode = #tpu.pipeline_mode<synchronous>, transform_indices = @transform_3, window_bounds = array<i64: 32, 32>}, {pipeline_mode = #tpu.pipeline_mode<synchronous>, transform_indices = @transform_4, window_bounds = array<i64: 1, 32>}, {pipeline_mode = #tpu.pipeline_mode<synchronous>, transform_indices = @transform_5, window_bounds = array<i64: 32, 32>}, {pipeline_mode = #tpu.pipeline_mode<synchronous>, transform_indices = @transform_6, window_bounds = array<i64: 1, 32>}, {pipeline_mode = #tpu.pipeline_mode<synchronous>, transform_indices = @transform_7, window_bounds = array<i64: 32, 32>}, {pipeline_mode = #tpu.pipeline_mode<synchronous>, transform_indices = @transform_8, window_bounds = array<i64: 1, 32>}, {pipeline_mode = #tpu.pipeline_mode<synchronous>, transform_indices = @transform_9, window_bounds = array<i64: 32, 32>}, {pipeline_mode = #tpu.pipeline_mode<synchronous>, transform_indices = @transform_10, window_bounds = array<i64: 1, 32>}, {pipeline_mode = #tpu.pipeline_mode<synchronous>, transform_indices = @transform_11, window_bounds = array<i64: 32, 32>}, {pipeline_mode = #tpu.pipeline_mode<synchronous>, transform_indices = @transform_12, window_bounds = array<i64: 1, 32>}, {pipeline_mode = #tpu.pipeline_mode<synchronous>, transform_indices = @transform_13, window_bounds = array<i64: 32, 128>}, {pipeline_mode = #tpu.pipeline_mode<synchronous>, transform_indices = @transform_14, window_bounds = array<i64: 1, 128>}, {transform_indices = @transform_15, window_bounds = array<i64: 16, 128>}]} {
    %c0 = arith.constant 0 : index
    %c0_0 = arith.constant 0 : index
    %0 = vector.load %arg1[%c0, %c0_0] : memref<16x32xf32, #tpu.memory_space<vmem>>, vector<16x32xf32>
    %cst = arith.constant 0.000000e+00 : f32
    %1 = vector.broadcast %cst : f32 to vector<16x32xf32>
    %2 = arith.maximumf %0, %1 : vector<16x32xf32>
    %c0_1 = arith.constant 0 : index
    %c0_2 = arith.constant 0 : index
    %3 = vector.load %arg3[%c0_1, %c0_2] : memref<32x32xf32, #tpu.memory_space<vmem>>, vector<32x32xf32>
    %cst_3 = arith.constant dense<0.000000e+00> : vector<16x32xf32>
    %4 = tpu.matmul %2, %3, %cst_3 {dimension_numbers = #tpu.dot_dimension_numbers<[1], [0], [0], [1], [0, 0, 1, 1], [], []>} : vector<16x32xf32>, vector<32x32xf32>, vector<16x32xf32> -> vector<16x32xf32>
    %c0_4 = arith.constant 0 : index
    %c0_5 = arith.constant 0 : index
    %5 = vector.load %arg2[%c0_4, %c0_5] : memref<16x32xf32, #tpu.memory_space<vmem>>, vector<16x32xf32>
    %cst_6 = arith.constant 0.000000e+00 : f32
    %6 = vector.broadcast %cst_6 : f32 to vector<16x32xf32>
    %7 = arith.maximumf %5, %6 : vector<16x32xf32>
    %c0_7 = arith.constant 0 : index
    %c0_8 = arith.constant 0 : index
    %8 = vector.load %arg4[%c0_7, %c0_8] : memref<32x32xf32, #tpu.memory_space<vmem>>, vector<32x32xf32>
    %cst_9 = arith.constant dense<0.000000e+00> : vector<16x32xf32>
    %9 = tpu.matmul %7, %8, %cst_9 {dimension_numbers = #tpu.dot_dimension_numbers<[1], [0], [0], [1], [0, 0, 1, 1], [], []>} : vector<16x32xf32>, vector<32x32xf32>, vector<16x32xf32> -> vector<16x32xf32>
    %10 = arith.addf %4, %9 : vector<16x32xf32>
    %c0_10 = arith.constant 0 : index
    %c0_11 = arith.constant 0 : index
    %11 = vector.load %arg5[%c0_10, %c0_11] : memref<1x32xf32, #tpu.memory_space<vmem>>, vector<1x32xf32>
    %12 = vector.broadcast %11 : vector<1x32xf32> to vector<16x32xf32>
    %13 = arith.addf %10, %12 : vector<16x32xf32>
    %cst_12 = arith.constant 0.000000e+00 : f32
    %14 = vector.broadcast %cst_12 : f32 to vector<16x32xf32>
    %15 = arith.maximumf %13, %14 : vector<16x32xf32>
    %c0_13 = arith.constant 0 : index
    %c0_14 = arith.constant 0 : index
    %16 = vector.load %arg6[%c0_13, %c0_14] : memref<32x32xf32, #tpu.memory_space<vmem>>, vector<32x32xf32>
    %cst_15 = arith.constant dense<0.000000e+00> : vector<16x32xf32>
    %17 = tpu.matmul %15, %16, %cst_15 {dimension_numbers = #tpu.dot_dimension_numbers<[1], [0], [0], [1], [0, 0, 1, 1], [], []>} : vector<16x32xf32>, vector<32x32xf32>, vector<16x32xf32> -> vector<16x32xf32>
    %c0_16 = arith.constant 0 : index
    %c0_17 = arith.constant 0 : index
    %18 = vector.load %arg7[%c0_16, %c0_17] : memref<1x32xf32, #tpu.memory_space<vmem>>, vector<1x32xf32>
    %19 = vector.broadcast %18 : vector<1x32xf32> to vector<16x32xf32>
    %20 = arith.addf %17, %19 : vector<16x32xf32>
    %cst_18 = arith.constant 0.000000e+00 : f32
    %21 = vector.broadcast %cst_18 : f32 to vector<16x32xf32>
    %22 = arith.maximumf %20, %21 : vector<16x32xf32>
    %c0_19 = arith.constant 0 : index
    %c0_20 = arith.constant 0 : index
    %23 = vector.load %arg8[%c0_19, %c0_20] : memref<32x32xf32, #tpu.memory_space<vmem>>, vector<32x32xf32>
    %cst_21 = arith.constant dense<0.000000e+00> : vector<16x32xf32>
    %24 = tpu.matmul %22, %23, %cst_21 {dimension_numbers = #tpu.dot_dimension_numbers<[1], [0], [0], [1], [0, 0, 1, 1], [], []>} : vector<16x32xf32>, vector<32x32xf32>, vector<16x32xf32> -> vector<16x32xf32>
    %c0_22 = arith.constant 0 : index
    %c0_23 = arith.constant 0 : index
    %25 = vector.load %arg9[%c0_22, %c0_23] : memref<1x32xf32, #tpu.memory_space<vmem>>, vector<1x32xf32>
    %26 = vector.broadcast %25 : vector<1x32xf32> to vector<16x32xf32>
    %27 = arith.addf %24, %26 : vector<16x32xf32>
    %28 = arith.addf %13, %27 : vector<16x32xf32>
    %cst_24 = arith.constant 0.000000e+00 : f32
    %29 = vector.broadcast %cst_24 : f32 to vector<16x32xf32>
    %30 = arith.maximumf %28, %29 : vector<16x32xf32>
    %c0_25 = arith.constant 0 : index
    %c0_26 = arith.constant 0 : index
    %31 = vector.load %arg10[%c0_25, %c0_26] : memref<32x32xf32, #tpu.memory_space<vmem>>, vector<32x32xf32>
    %cst_27 = arith.constant dense<0.000000e+00> : vector<16x32xf32>
    %32 = tpu.matmul %30, %31, %cst_27 {dimension_numbers = #tpu.dot_dimension_numbers<[1], [0], [0], [1], [0, 0, 1, 1], [], []>} : vector<16x32xf32>, vector<32x32xf32>, vector<16x32xf32> -> vector<16x32xf32>
    %c0_28 = arith.constant 0 : index
    %c0_29 = arith.constant 0 : index
    %33 = vector.load %arg11[%c0_28, %c0_29] : memref<1x32xf32, #tpu.memory_space<vmem>>, vector<1x32xf32>
    %34 = vector.broadcast %33 : vector<1x32xf32> to vector<16x32xf32>
    %35 = arith.addf %32, %34 : vector<16x32xf32>
    %cst_30 = arith.constant 0.000000e+00 : f32
    %36 = vector.broadcast %cst_30 : f32 to vector<16x32xf32>
    %37 = arith.maximumf %35, %36 : vector<16x32xf32>
    %c0_31 = arith.constant 0 : index
    %c0_32 = arith.constant 0 : index
    %38 = vector.load %arg12[%c0_31, %c0_32] : memref<32x32xf32, #tpu.memory_space<vmem>>, vector<32x32xf32>
    %cst_33 = arith.constant dense<0.000000e+00> : vector<16x32xf32>
    %39 = tpu.matmul %37, %38, %cst_33 {dimension_numbers = #tpu.dot_dimension_numbers<[1], [0], [0], [1], [0, 0, 1, 1], [], []>} : vector<16x32xf32>, vector<32x32xf32>, vector<16x32xf32> -> vector<16x32xf32>
    %c0_34 = arith.constant 0 : index
    %c0_35 = arith.constant 0 : index
    %40 = vector.load %arg13[%c0_34, %c0_35] : memref<1x32xf32, #tpu.memory_space<vmem>>, vector<1x32xf32>
    %41 = vector.broadcast %40 : vector<1x32xf32> to vector<16x32xf32>
    %42 = arith.addf %39, %41 : vector<16x32xf32>
    %43 = arith.addf %28, %42 : vector<16x32xf32>
    %cst_36 = arith.constant 0.000000e+00 : f32
    %44 = vector.broadcast %cst_36 : f32 to vector<16x32xf32>
    %45 = arith.maximumf %43, %44 : vector<16x32xf32>
    %c0_37 = arith.constant 0 : index
    %c0_38 = arith.constant 0 : index
    %46 = vector.load %arg14[%c0_37, %c0_38] : memref<32x128xf32, #tpu.memory_space<vmem>>, vector<32x128xf32>
    %cst_39 = arith.constant dense<0.000000e+00> : vector<16x128xf32>
    %47 = tpu.matmul %45, %46, %cst_39 {dimension_numbers = #tpu.dot_dimension_numbers<[1], [0], [0], [1], [0, 0, 1, 1], [], []>} : vector<16x32xf32>, vector<32x128xf32>, vector<16x128xf32> -> vector<16x128xf32>
    %c0_40 = arith.constant 0 : index
    %c0_41 = arith.constant 0 : index
    %48 = vector.load %arg15[%c0_40, %c0_41] : memref<1x128xf32, #tpu.memory_space<vmem>>, vector<1x128xf32>
    %49 = vector.broadcast %48 : vector<1x128xf32> to vector<16x128xf32>
    %50 = arith.addf %47, %49 : vector<16x128xf32>
    %c0_42 = arith.constant 0 : index
    %c0_43 = arith.constant 0 : index
    %51 = vector.load %arg16[%c0_42, %c0_43] : memref<16x128xf32, #tpu.memory_space<vmem>>, vector<16x128xf32>
    tpu.vector_store %arg16[%c0_42, %c0_43], %50 {strides = array<i32>} : memref<16x128xf32, #tpu.memory_space<vmem>>, vector<16x128xf32>,
    return
  }
  func.func @transform_0(%arg0: i32) -> (i32, i32) {
    %c0_i32 = arith.constant 0 : i32
    %c0_i32_0 = arith.constant 0 : i32
    return %arg0, %c0_i32 : i32, i32
  }
  func.func @transform_1(%arg0: i32) -> (i32, i32) {
    %c0_i32 = arith.constant 0 : i32
    %c0_i32_0 = arith.constant 0 : i32
    return %arg0, %c0_i32 : i32, i32
  }
  func.func @transform_2(%arg0: i32) -> (i32, i32) {
    %c0_i32 = arith.constant 0 : i32
    %c0_i32_0 = arith.constant 0 : i32
    %c0_i32_1 = arith.constant 0 : i32
    return %c0_i32, %c0_i32_0 : i32, i32
  }
  func.func @transform_3(%arg0: i32) -> (i32, i32) {
    %c0_i32 = arith.constant 0 : i32
    %c0_i32_0 = arith.constant 0 : i32
    %c0_i32_1 = arith.constant 0 : i32
    return %c0_i32, %c0_i32_0 : i32, i32
  }
  func.func @transform_4(%arg0: i32) -> (i32, i32) {
    %c0_i32 = arith.constant 0 : i32
    %c0_i32_0 = arith.constant 0 : i32
    %c0_i32_1 = arith.constant 0 : i32
    return %c0_i32, %c0_i32_0 : i32, i32
  }
  func.func @transform_5(%arg0: i32) -> (i32, i32) {
    %c0_i32 = arith.constant 0 : i32
    %c0_i32_0 = arith.constant 0 : i32
    %c0_i32_1 = arith.constant 0 : i32
    return %c0_i32, %c0_i32_0 : i32, i32
  }
  func.func @transform_6(%arg0: i32) -> (i32, i32) {
    %c0_i32 = arith.constant 0 : i32
    %c0_i32_0 = arith.constant 0 : i32
    %c0_i32_1 = arith.constant 0 : i32
    return %c0_i32, %c0_i32_0 : i32, i32
  }
  func.func @transform_7(%arg0: i32) -> (i32, i32) {
    %c0_i32 = arith.constant 0 : i32
    %c0_i32_0 = arith.constant 0 : i32
    %c0_i32_1 = arith.constant 0 : i32
    return %c0_i32, %c0_i32_0 : i32, i32
  }
  func.func @transform_8(%arg0: i32) -> (i32, i32) {
    %c0_i32 = arith.constant 0 : i32
    %c0_i32_0 = arith.constant 0 : i32
    %c0_i32_1 = arith.constant 0 : i32
    return %c0_i32, %c0_i32_0 : i32, i32
  }
  func.func @transform_9(%arg0: i32) -> (i32, i32) {
    %c0_i32 = arith.constant 0 : i32
    %c0_i32_0 = arith.constant 0 : i32
    %c0_i32_1 = arith.constant 0 : i32
    return %c0_i32, %c0_i32_0 : i32, i32
  }
  func.func @transform_10(%arg0: i32) -> (i32, i32) {
    %c0_i32 = arith.constant 0 : i32
    %c0_i32_0 = arith.constant 0 : i32
    %c0_i32_1 = arith.constant 0 : i32
    return %c0_i32, %c0_i32_0 : i32, i32
  }
  func.func @transform_11(%arg0: i32) -> (i32, i32) {
    %c0_i32 = arith.constant 0 : i32
    %c0_i32_0 = arith.constant 0 : i32
    %c0_i32_1 = arith.constant 0 : i32
    return %c0_i32, %c0_i32_0 : i32, i32
  }
  func.func @transform_12(%arg0: i32) -> (i32, i32) {
    %c0_i32 = arith.constant 0 : i32
    %c0_i32_0 = arith.constant 0 : i32
    %c0_i32_1 = arith.constant 0 : i32
    return %c0_i32, %c0_i32_0 : i32, i32
  }
  func.func @transform_13(%arg0: i32) -> (i32, i32) {
    %c0_i32 = arith.constant 0 : i32
    %c0_i32_0 = arith.constant 0 : i32
    %c0_i32_1 = arith.constant 0 : i32
    return %c0_i32, %c0_i32_0 : i32, i32
  }
  func.func @transform_14(%arg0: i32) -> (i32, i32) {
    %c0_i32 = arith.constant 0 : i32
    %c0_i32_0 = arith.constant 0 : i32
    %c0_i32_1 = arith.constant 0 : i32
    return %c0_i32, %c0_i32_0 : i32, i32
  }
  func.func @transform_15(%arg0: i32) -> (i32, i32) {
    %c0_i32 = arith.constant 0 : i32
    %c0_i32_0 = arith.constant 0 : i32
    return %arg0, %c0_i32 : i32, i32
  }
}

</mosaic_0001>

<llo_original>
// kernel: tpu_custom_call.1
$region0: #{tpu_custom_call.1}
  #allocation0 [shape = 'u32[]', space=smem, size = 0x4, offset = 0x4, fixed_abs, tag = 'smem constant byte address 0x4 - core index']
  #allocation1 [shape = 'u32[144,128]{1,0:T(1,128)}', space=vmem, size = 0x12000, scoped, tag = 'internal scratch']
  %s0 = inlined_call_operand.hbm [shape: f32[16,32], index: 0, kind: input, shape index: {}]
  %s1 = inlined_call_operand.hbm [shape: f32[16,32], index: 1, kind: input, shape index: {}]
  %s2 = inlined_call_operand.hbm [shape: f32[32,32], index: 2, kind: input, shape index: {}]
  %s3 = inlined_call_operand.hbm [shape: f32[32,32], index: 3, kind: input, shape index: {}]
  %s4 = inlined_call_operand.vmem [shape: f32[1,32], index: 4, kind: input, shape index: {}]
  %s5 = inlined_call_operand.hbm [shape: f32[32,32], index: 5, kind: input, shape index: {}]
  %s6 = inlined_call_operand.vmem [shape: f32[1,32], index: 6, kind: input, shape index: {}]
  %s7 = inlined_call_operand.hbm [shape: f32[32,32], index: 7, kind: input, shape index: {}]
  %s8 = inlined_call_operand.hbm [shape: f32[1,32], index: 8, kind: input, shape index: {}]
  %s9 = inlined_call_operand.vmem [shape: f32[32,32], index: 9, kind: input, shape index: {}]
  %s10 = inlined_call_operand.vmem [shape: f32[1,32], index: 10, kind: input, shape index: {}]
  %s11 = inlined_call_operand.hbm [shape: f32[32,32], index: 11, kind: input, shape index: {}]
  %s12 = inlined_call_operand.vmem [shape: f32[1,32], index: 12, kind: input, shape index: {}]
  %s13 = inlined_call_operand.hbm [shape: f32[32,128], index: 13, kind: input, shape index: {}]
  %s14 = inlined_call_operand.vmem [shape: f32[1,128], index: 14, kind: input, shape index: {}]
  %s15 = inlined_call_operand.hbm [shape: f32[16,128], index: 15, kind: output, shape index: {}]
  %s16 = sld [smem:[#allocation0]]
  $region106: #{tpu_custom_call.1} parent=0
    _
  %s18 = ssub.s32 1, %s16
  %s19 = scalar_select 0, %s18, %s16
  $region1: #{tpu_custom_call.1} parent=0
    #allocation2 [shape = 'u8[8192]{0}', space=vmem, size = 0x2000, scoped, tag = 'input window, operand 0, single buffered']
    #allocation3 [shape = 's32[1]{0}', space=sflag, size = 0x4, scoped, tag = 'scoped memory for tpu_custom_call.1']
    #allocation4 [shape = 's32[1]{0}', space=sflag, size = 0x4, scoped, tag = 'scoped memory for tpu_custom_call.1']
    #allocation5 [shape = 'u8[8192]{0}', space=vmem, size = 0x2000, scoped, tag = 'input window, operand 1, single buffered']
    #allocation6 [shape = 's32[1]{0}', space=sflag, size = 0x4, scoped, tag = 'scoped memory for tpu_custom_call.1']
    #allocation7 [shape = 'u8[16384]{0}', space=vmem, size = 0x4000, scoped, tag = 'input window, operand 2, single buffered']
    #allocation8 [shape = 'u8[16384]{0}', space=vmem, size = 0x4000, scoped, tag = 'input window, operand 3, single buffered']
    #allocation9 [shape = 's32[1]{0}', space=sflag, size = 0x4, scoped, tag = 'scoped memory for tpu_custom_call.1']
    #allocation10 [shape = 'u8[16384]{0}', space=vmem, size = 0x4000, scoped, tag = 'input window, operand 5, single buffered']
    #allocation11 [shape = 'u8[16384]{0}', space=vmem, size = 0x4000, scoped, tag = 'input window, operand 7, single buffered']
    #allocation12 [shape = 's32[1]{0}', space=sflag, size = 0x4, scoped, tag = 'scoped memory for tpu_custom_call.1']
    #allocation13 [shape = 'u8[512]{0}', space=vmem, size = 0x400, scoped, tag = 'input window, operand 8, single buffered']
    #allocation14 [shape = 'u8[16384]{0}', space=vmem, size = 0x4000, scoped, tag = 'input window, operand 11, single buffered']
    #allocation15 [shape = 's32[1]{0}', space=sflag, size = 0x4, scoped, tag = 'scoped memory for tpu_custom_call.1']
    #allocation16 [shape = 'u8[16384]{0}', space=vmem, size = 0x4000, scoped, tag = 'input window, operand 13, single buffered']
    #allocation17 [shape = 'u8[8192]{0}', space=vmem, size = 0x2000, scoped, tag = 'output window, operand 0, single buffered']
    %20 = vsyncpa [#allocation3], 0
    %21 = vsyncpa [#allocation6], 0
    %22 = vsyncpa [#allocation9], 0
    %23 = vsyncpa [#allocation12], 0
    %24 = vsyncpa [#allocation15], 0
    %25 = vsyncpa [#allocation4], 0
    // Predicated region
    $region2: #{tpu_custom_call.1} parent=1 // pred_check
      _
    $region3: #{tpu_custom_call.1} parent=1 // pred_check_branch
      %27 = sbr.rel (0) target = $region5
    $region4: #{tpu_custom_call.1} parent=1 // pred_region
      %s29 = ssub.s32 256, 256
      %30 = vsyncadd [#allocation3], %s29
      %s31 = sshll.u32 [#allocation2], 4
      %s32 = int_to_ptr.vmem [resolvable:$true] %s31
      %37 = dma.hbm_to_vmem [thread:$0]  %s0, 256, %s32, [#allocation3], 128, 128, 8
    $region5: #{tpu_custom_call.1} parent=1 // pred_fallthru
      _
    // Predicated region
    $region6: #{tpu_custom_call.1} parent=1 // pred_check
      _
    $region7: #{tpu_custom_call.1} parent=1 // pred_check_branch
      %39 = sbr.rel (0) target = $region9
    $region8: #{tpu_custom_call.1} parent=1 // pred_region
      %s41 = ssub.s32 256, 256
      %42 = vsyncadd [#allocation6], %s41
      %s43 = sshll.u32 [#allocation5], 4
      %s44 = int_to_ptr.vmem [resolvable:$true] %s43
      %49 = dma.hbm_to_vmem [thread:$0]  %s1, 256, %s44, [#allocation6], 128, 128, 8
    $region9: #{tpu_custom_call.1} parent=1 // pred_fallthru
      _
    // Predicated region
    $region10: #{tpu_custom_call.1} parent=1 // pred_check
      _
    $region11: #{tpu_custom_call.1} parent=1 // pred_check_branch
      %51 = sbr.rel (0) target = $region13
    $region12: #{tpu_custom_call.1} parent=1 // pred_region
      %s53 = ssub.s32 512, 512
      %54 = vsyncadd [#allocation6], %s53
      %s55 = sshll.u32 [#allocation7], 4
      %s56 = int_to_ptr.vmem [resolvable:$true] %s55
      %61 = dma.hbm_to_vmem [thread:$0]  %s2, 512, %s56, [#allocation6], 128, 128, 8
    $region13: #{tpu_custom_call.1} parent=1 // pred_fallthru
      _
    // Predicated region
    $region14: #{tpu_custom_call.1} parent=1 // pred_check
      _
    $region15: #{tpu_custom_call.1} parent=1 // pred_check_branch
      %63 = sbr.rel (0) target = $region17
    $region16: #{tpu_custom_call.1} parent=1 // pred_region
      %s65 = ssub.s32 512, 512
      %66 = vsyncadd [#allocation9], %s65
      %s67 = sshll.u32 [#allocation8], 4
      %s68 = int_to_ptr.vmem [resolvable:$true] %s67
      %73 = dma.hbm_to_vmem [thread:$0]  %s3, 512, %s68, [#allocation9], 128, 128, 8
    $region17: #{tpu_custom_call.1} parent=1 // pred_fallthru
      _
    // Predicated region
    $region18: #{tpu_custom_call.1} parent=1 // pred_check
      _
    $region19: #{tpu_custom_call.1} parent=1 // pred_check_branch
      %75 = sbr.rel (0) target = $region21
    $region20: #{tpu_custom_call.1} parent=1 // pred_region
      _
    $region21: #{tpu_custom_call.1} parent=1 // pred_fallthru
      _
    // Predicated region
    $region22: #{tpu_custom_call.1} parent=1 // pred_check
      _
    $region23: #{tpu_custom_call.1} parent=1 // pred_check_branch
      %77 = sbr.rel (0) target = $region25
    $region24: #{tpu_custom_call.1} parent=1 // pred_region
      %s79 = ssub.s32 512, 512
      %80 = vsyncadd [#allocation9], %s79
      %s81 = sshll.u32 [#allocation10], 4
      %s82 = int_to_ptr.vmem [resolvable:$true] %s81
      %87 = dma.hbm_to_vmem [thread:$0]  %s5, 512, %s82, [#allocation9], 128, 128, 8
    $region25: #{tpu_custom_call.1} parent=1 // pred_fallthru
      _
    // Predicated region
    $region26: #{tpu_custom_call.1} parent=1 // pred_check
      _
    $region27: #{tpu_custom_call.1} parent=1 // pred_check_branch
      %89 = sbr.rel (0) target = $region29
    $region28: #{tpu_custom_call.1} parent=1 // pred_region
      _
    $region29: #{tpu_custom_call.1} parent=1 // pred_fallthru
      _
    // Predicated region
    $region30: #{tpu_custom_call.1} parent=1 // pred_check
      _
    $region31: #{tpu_custom_call.1} parent=1 // pred_check_branch
      %91 = sbr.rel (0) target = $region33
    $region32: #{tpu_custom_call.1} parent=1 // pred_region
      %s93 = ssub.s32 512, 512
      %94 = vsyncadd [#allocation12], %s93
      %s95 = sshll.u32 [#allocation11], 4
      %s96 = int_to_ptr.vmem [resolvable:$true] %s95
      %101 = dma.hbm_to_vmem [thread:$0]  %s7, 512, %s96, [#allocation12], 128, 128, 8
    $region33: #{tpu_custom_call.1} parent=1 // pred_fallthru
      _
    // Predicated region
    $region34: #{tpu_custom_call.1} parent=1 // pred_check
      _
    $region35: #{tpu_custom_call.1} parent=1 // pred_check_branch
      %103 = sbr.rel (0) target = $region37
    $region36: #{tpu_custom_call.1} parent=1 // pred_region
      %s105 = ssub.s32 16, 16
      %106 = vsyncadd [#allocation12], %s105
      %s108 = sshll.u32 [#allocation13], 4
      %s109 = int_to_ptr.vmem [resolvable:$true] %s108
      %111 = dma.hbm_to_vmem [thread:$0]  %s8, 16, %s109, [#allocation12]
    $region37: #{tpu_custom_call.1} parent=1 // pred_fallthru
      _
    // Predicated region
    $region38: #{tpu_custom_call.1} parent=1 // pred_check
      _
    $region39: #{tpu_custom_call.1} parent=1 // pred_check_branch
      %113 = sbr.rel (0) target = $region41
    $region40: #{tpu_custom_call.1} parent=1 // pred_region
      _
    $region41: #{tpu_custom_call.1} parent=1 // pred_fallthru
      _
    // Predicated region
    $region42: #{tpu_custom_call.1} parent=1 // pred_check
      _
    $region43: #{tpu_custom_call.1} parent=1 // pred_check_branch
      %115 = sbr.rel (0) target = $region45
    $region44: #{tpu_custom_call.1} parent=1 // pred_region
      _
    $region45: #{tpu_custom_call.1} parent=1 // pred_fallthru
      _
    // Predicated region
    $region46: #{tpu_custom_call.1} parent=1 // pred_check
      _
    $region47: #{tpu_custom_call.1} parent=1 // pred_check_branch
      %117 = sbr.rel (0) target = $region49
    $region48: #{tpu_custom_call.1} parent=1 // pred_region
      %s119 = ssub.s32 512, 512
      %120 = vsyncadd [#allocation15], %s119
      %s121 = sshll.u32 [#allocation14], 4
      %s122 = int_to_ptr.vmem [resolvable:$true] %s121
      %127 = dma.hbm_to_vmem [thread:$0]  %s11, 512, %s122, [#allocation15], 128, 128, 8
    $region49: #{tpu_custom_call.1} parent=1 // pred_fallthru
      _
    // Predicated region
    $region50: #{tpu_custom_call.1} parent=1 // pred_check
      _
    $region51: #{tpu_custom_call.1} parent=1 // pred_check_branch
      %129 = sbr.rel (0) target = $region53
    $region52: #{tpu_custom_call.1} parent=1 // pred_region
      _
    $region53: #{tpu_custom_call.1} parent=1 // pred_fallthru
      _
    // Predicated region
    $region54: #{tpu_custom_call.1} parent=1 // pred_check
      _
    $region55: #{tpu_custom_call.1} parent=1 // pred_check_branch
      %131 = sbr.rel (0) target = $region57
    $region56: #{tpu_custom_call.1} parent=1 // pred_region
      %s133 = ssub.s32 512, 512
      %134 = vsyncadd [#allocation15], %s133
      %s135 = sshll.u32 [#allocation16], 4
      %s136 = int_to_ptr.vmem [resolvable:$true] %s135
      %141 = dma.hbm_to_vmem [thread:$0]  %s13, 512, %s136, [#allocation15], 128, 128, 8
    $region57: #{tpu_custom_call.1} parent=1 // pred_fallthru
      _
    // Predicated region
    $region58: #{tpu_custom_call.1} parent=1 // pred_check
      _
    $region59: #{tpu_custom_call.1} parent=1 // pred_check_branch
      %143 = sbr.rel (0) target = $region61
    $region60: #{tpu_custom_call.1} parent=1 // pred_region
      _
    $region61: #{tpu_custom_call.1} parent=1 // pred_fallthru
      _
    // Predicated region
    $region62: #{tpu_custom_call.1} parent=1 // pred_check
      _
    $region63: #{tpu_custom_call.1} parent=1 // pred_check_branch
      %145 = sbr.rel (0) target = $region65
    $region64: #{tpu_custom_call.1} parent=1 // pred_region
      %146 = dma.done [#allocation3], 256
    $region65: #{tpu_custom_call.1} parent=1 // pred_fallthru
      _
    // Predicated region
    $region66: #{tpu_custom_call.1} parent=1 // pred_check
      _
    $region67: #{tpu_custom_call.1} parent=1 // pred_check_branch
      %148 = sbr.rel (0) target = $region69
    $region68: #{tpu_custom_call.1} parent=1 // pred_region
      %149 = dma.done [#allocation6], 256
    $region69: #{tpu_custom_call.1} parent=1 // pred_fallthru
      _
    // Predicated region
    $region70: #{tpu_custom_call.1} parent=1 // pred_check
      _
    $region71: #{tpu_custom_call.1} parent=1 // pred_check_branch
      %151 = sbr.rel (0) target = $region73
    $region72: #{tpu_custom_call.1} parent=1 // pred_region
      %152 = dma.done [#allocation6], 512
    $region73: #{tpu_custom_call.1} parent=1 // pred_fallthru
      _
    // Predicated region
    $region74: #{tpu_custom_call.1} parent=1 // pred_check
      _
    $region75: #{tpu_custom_call.1} parent=1 // pred_check_branch
      %154 = sbr.rel (0) target = $region77
    $region76: #{tpu_custom_call.1} parent=1 // pred_region
      %155 = dma.done [#allocation9], 512
    $region77: #{tpu_custom_call.1} parent=1 // pred_fallthru
      _
    // Predicated region
    $region78: #{tpu_custom_call.1} parent=1 // pred_check
      _
    $region79: #{tpu_custom_call.1} parent=1 // pred_check_branch
      %157 = sbr.rel (0) target = $region81
    $region80: #{tpu_custom_call.1} parent=1 // pred_region
      %158 = dma.done [#allocation9], 512
    $region81: #{tpu_custom_call.1} parent=1 // pred_fallthru
      _
    // Predicated region
    $region82: #{tpu_custom_call.1} parent=1 // pred_check
      _
    $region83: #{tpu_custom_call.1} parent=1 // pred_check_branch
      %160 = sbr.rel (0) target = $region85
    $region84: #{tpu_custom_call.1} parent=1 // pred_region
      %161 = dma.done [#allocation12], 512
    $region85: #{tpu_custom_call.1} parent=1 // pred_fallthru
      _
    // Predicated region
    $region86: #{tpu_custom_call.1} parent=1 // pred_check
      _
    $region87: #{tpu_custom_call.1} parent=1 // pred_check_branch
      %163 = sbr.rel (0) target = $region89
    $region88: #{tpu_custom_call.1} parent=1 // pred_region
      %164 = dma.done [#allocation12], 16
    $region89: #{tpu_custom_call.1} parent=1 // pred_fallthru
      _
    // Predicated region
    $region90: #{tpu_custom_call.1} parent=1 // pred_check
      _
    $region91: #{tpu_custom_call.1} parent=1 // pred_check_branch
      %166 = sbr.rel (0) target = $region93
    $region92: #{tpu_custom_call.1} parent=1 // pred_region
      %167 = dma.done [#allocation15], 512
    $region93: #{tpu_custom_call.1} parent=1 // pred_fallthru
      _
    // Predicated region
    $region94: #{tpu_custom_call.1} parent=1 // pred_check
      _
    $region95: #{tpu_custom_call.1} parent=1 // pred_check_branch
      %169 = sbr.rel (0) target = $region97
    $region96: #{tpu_custom_call.1} parent=1 // pred_region
      %170 = dma.done [#allocation15], 512
    $region97: #{tpu_custom_call.1} parent=1 // pred_fallthru
      _
    %v171 = vld [vmem:[#allocation2] sm:$0xff]
    %v172 = vld [vmem:[#allocation2 + $0x8] sm:$0xff]
    %v173 = vmax.f32 %v171, 0.0
    %v174 = vmax.f32 %v172, 0.0
    %v175 = vld [vmem:[#allocation7] sm:$0xff]
    %v176 = vld [vmem:[#allocation7 + $0x8] sm:$0xff]
    %v177 = vld [vmem:[#allocation7 + $0x10] sm:$0xff]
    %v178 = vld [vmem:[#allocation7 + $0x18] sm:$0xff]
    %v179 = vld [vmem:[#allocation5] sm:$0xff]
    %v180 = vld [vmem:[#allocation5 + $0x8] sm:$0xff]
    %v181 = vmax.f32 %v179, 0.0
    %v182 = vmax.f32 %v180, 0.0
    %v183 = vld [vmem:[#allocation8] sm:$0xff]
    %v184 = vld [vmem:[#allocation8 + $0x8] sm:$0xff]
    %v185 = vld [vmem:[#allocation8 + $0x10] sm:$0xff]
    %v186 = vld [vmem:[#allocation8 + $0x18] sm:$0xff]
    %vm187 = vcmask 261120
    %v189 = vsel %vm187, %v181, 0
    %v192 = vsel %vm187, %v182, 0
    %194 = vmatprep.subr.mxu0 0.0
    %195 = vmatpush1.msra.mxu0 %v183
    %196 = vmatprep.subr.mxu0 0.0
    %197 = vmatpush1.msra.mxu0 %v184
    %198 = vmatprep.subr.mxu0 0.0
    %199 = vmatpush1.msra.mxu0 %v185
    %200 = vmatprep.subr.mxu0 0.0
    %201 = vmatpush1.msra.mxu0 %v186
    %202 = vmatprep.subr.mxu0 0.0
    %203 = vmatpush1.msra.mxu0 0.0
    %204 = vmatprep.subr.mxu0 0.0
    %205 = vmatpush1.msra.mxu0 0.0
    %206 = vmatprep.subr.mxu0 0.0
    %207 = vmatpush1.msra.mxu0 0.0
    %208 = vmatprep.subr.mxu0 0.0
    %209 = vmatpush1.msra.mxu0 0.0
    %210 = vmatprep.subr.mxu0 0.0
    %211 = vmatpush1.msra.mxu0 0.0
    %212 = vmatprep.subr.mxu0 0.0
    %213 = vmatpush1.msra.mxu0 0.0
    %214 = vmatprep.subr.mxu0 0.0
    %215 = vmatpush1.msra.mxu0 0.0
    %216 = vmatprep.subr.mxu0 0.0
    %217 = vmatpush1.msra.mxu0 0.0
    %218 = vmatprep.subr.mxu0 0.0
    %219 = vmatpush1.msra.mxu0 0.0
    %220 = vmatprep.subr.mxu0 0.0
    %221 = vmatpush1.msra.mxu0 0.0
    %222 = vmatprep.subr.mxu0 0.0
    %223 = vmatpush1.msra.mxu0 0.0
    %224 = vmatprep.subr.mxu0 0.0
    %225 = vmatpush1.msra.mxu0 0.0
    %226 = vmatprep.subr.mxu0 0.0
    %227 = vmatpush1.msra.mxu0 0.0
    %228 = vmatprep.subr.mxu0 0.0
    %229 = vmatpush1.msra.mxu0 0.0
    %230 = vmatprep.subr.mxu0 0.0
    %231 = vmatpush1.msra.mxu0 0.0
    %232 = vmatprep.subr.mxu0 0.0
    %233 = vmatpush1.msra.mxu0 0.0
    %234 = vmatprep.subr.mxu0 0.0
    %235 = vmatpush1.msra.mxu0 0.0
    %236 = vmatprep.subr.mxu0 0.0
    %237 = vmatpush1.msra.mxu0 0.0
    %238 = vmatprep.subr.mxu0 0.0
    %239 = vmatpush1.msra.mxu0 0.0
    %240 = vmatprep.subr.mxu0 0.0
    %241 = vmatpush1.msra.mxu0 0.0
    %242 = vmatprep.subr.mxu0 0.0
    %243 = vmatpush1.msra.mxu0 0.0
    %244 = vmatprep.subr.mxu0 0.0
    %245 = vmatpush1.msra.mxu0 0.0
    %246 = vmatprep.subr.mxu0 0.0
    %247 = vmatpush1.msra.mxu0 0.0
    %248 = vmatprep.subr.mxu0 0.0
    %249 = vmatpush1.msra.mxu0 0.0
    %250 = vmatprep.subr.mxu0 0.0
    %251 = vmatpush1.msra.mxu0 0.0
    %252 = vmatprep.subr.mxu0 0.0
    %253 = vmatpush1.msra.mxu0 0.0
    %254 = vmatprep.subr.mxu0 0.0
    %255 = vmatpush1.msra.mxu0 0.0
    %256 = vmatprep.subr.mxu0 0.0
    %257 = vmatpush1.msra.mxu0 0.0
    %258 = vmatprep.mubr.f32.mxu0 0.0
    %259 = vmatmul.mubr.f32.gmra.mrb[0].mxu0 %v189
    %v260 = vpop.f32.mrb[0].mxu0
    %v261 = vadd.f32 0.0, %v260
    %v262 = vpop.f32.mrb[0].mxu0
    %263 = vmatprep.mubr.f32.mxu0 0.0
    %264 = vmatmul.mubr.f32.gmra.mrb[0].mxu0 %v192
    %v265 = vpop.f32.mrb[0].mxu0
    %v266 = vadd.f32 0.0, %v265
    %v267 = vpop.f32.mrb[0].mxu0
    %268 = vdwg.mxu0
    %v270 = vsel %vm187, %v173, 0
    %v273 = vsel %vm187, %v174, 0
    %275 = vmatprep.subr.mxu0 0.0
    %276 = vmatpush1.msra.mxu0 %v175
    %277 = vmatprep.subr.mxu0 0.0
    %278 = vmatpush1.msra.mxu0 %v176
    %279 = vmatprep.subr.mxu0 0.0
    %280 = vmatpush1.msra.mxu0 %v177
    %281 = vmatprep.subr.mxu0 0.0
    %282 = vmatpush1.msra.mxu0 %v178
    %283 = vmatprep.subr.mxu0 0.0
    %284 = vmatpush1.msra.mxu0 0.0
    %285 = vmatprep.subr.mxu0 0.0
    %286 = vmatpush1.msra.mxu0 0.0
    %287 = vmatprep.subr.mxu0 0.0
    %288 = vmatpush1.msra.mxu0 0.0
    %289 = vmatprep.subr.mxu0 0.0
    %290 = vmatpush1.msra.mxu0 0.0
    %291 = vmatprep.subr.mxu0 0.0
    %292 = vmatpush1.msra.mxu0 0.0
    %293 = vmatprep.subr.mxu0 0.0
    %294 = vmatpush1.msra.mxu0 0.0
    %295 = vmatprep.subr.mxu0 0.0
    %296 = vmatpush1.msra.mxu0 0.0
    %297 = vmatprep.subr.mxu0 0.0
    %298 = vmatpush1.msra.mxu0 0.0
    %299 = vmatprep.subr.mxu0 0.0
    %300 = vmatpush1.msra.mxu0 0.0
    %301 = vmatprep.subr.mxu0 0.0
    %302 = vmatpush1.msra.mxu0 0.0
    %303 = vmatprep.subr.mxu0 0.0
    %304 = vmatpush1.msra.mxu0 0.0
    %305 = vmatprep.subr.mxu0 0.0
    %306 = vmatpush1.msra.mxu0 0.0
    %307 = vmatprep.subr.mxu0 0.0
    %308 = vmatpush1.msra.mxu0 0.0
    %309 = vmatprep.subr.mxu0 0.0
    %310 = vmatpush1.msra.mxu0 0.0
    %311 = vmatprep.subr.mxu0 0.0
    %312 = vmatpush1.msra.mxu0 0.0
    %313 = vmatprep.subr.mxu0 0.0
    %314 = vmatpush1.msra.mxu0 0.0
    %315 = vmatprep.subr.mxu0 0.0
    %316 = vmatpush1.msra.mxu0 0.0
    %317 = vmatprep.subr.mxu0 0.0
    %318 = vmatpush1.msra.mxu0 0.0
    %319 = vmatprep.subr.mxu0 0.0
    %320 = vmatpush1.msra.mxu0 0.0
    %321 = vmatprep.subr.mxu0 0.0
    %322 = vmatpush1.msra.mxu0 0.0
    %323 = vmatprep.subr.mxu0 0.0
    %324 = vmatpush1.msra.mxu0 0.0
    %325 = vmatprep.subr.mxu0 0.0
    %326 = vmatpush1.msra.mxu0 0.0
    %327 = vmatprep.subr.mxu0 0.0
    %328 = vmatpush1.msra.mxu0 0.0
    %329 = vmatprep.subr.mxu0 0.0
    %330 = vmatpush1.msra.mxu0 0.0
    %331 = vmatprep.subr.mxu0 0.0
    %332 = vmatpush1.msra.mxu0 0.0
    %333 = vmatprep.subr.mxu0 0.0
    %334 = vmatpush1.msra.mxu0 0.0
    %335 = vmatprep.subr.mxu0 0.0
    %336 = vmatpush1.msra.mxu0 0.0
    %337 = vmatprep.subr.mxu0 0.0
    %338 = vmatpush1.msra.mxu0 0.0
    %339 = vmatprep.mubr.f32.mxu0 0.0
    %340 = vmatmul.mubr.f32.gmra.mrb[0].mxu0 %v270
    %v341 = vpop.f32.mrb[0].mxu0
    %v342 = vadd.f32 %v261, %v341
    %v343 = vpop.f32.mrb[0].mxu0
    %344 = vmatprep.mubr.f32.mxu0 0.0
    %345 = vmatmul.mubr.f32.gmra.mrb[0].mxu0 %v273
    %v346 = vpop.f32.mrb[0].mxu0
    %v347 = vadd.f32 %v266, %v346
    %v348 = vpop.f32.mrb[0].mxu0
    %349 = vdwg.mxu0
    %v350 = vld [vmem:[%s4] sm:$0x1]
    %v352 = vlaneseq
    %v353 = vshrl.u32 %v352, 7
    %v354 = vsub.s32 0, %v353
    %v355 = vrot.slane %v350, %v354
    %v357 = vadd.f32 %v342, %v355
    %v358 = vadd.f32 %v347, %v355
    %v359 = vmax.f32 %v357, 0.0
    %v360 = vmax.f32 %v358, 0.0
    %v361 = vld [vmem:[#allocation10] sm:$0xff]
    %v362 = vld [vmem:[#allocation10 + $0x8] sm:$0xff]
    %v363 = vld [vmem:[#allocation10 + $0x10] sm:$0xff]
    %v364 = vld [vmem:[#allocation10 + $0x18] sm:$0xff]
    %v365 = vld [vmem:[%s6] sm:$0x1]
    %v367 = vlaneseq
    %v368 = vshrl.u32 %v367, 7
    %v369 = vsub.s32 0, %v368
    %v370 = vrot.slane %v365, %v369
    %v373 = vsel %vm187, %v359, 0
    %v376 = vsel %vm187, %v360, 0
    %378 = vmatprep.subr.mxu0 0.0
    %379 = vmatpush1.msra.mxu0 %v361
    %380 = vmatprep.subr.mxu0 0.0
    %381 = vmatpush1.msra.mxu0 %v362
    %382 = vmatprep.subr.mxu0 0.0
    %383 = vmatpush1.msra.mxu0 %v363
    %384 = vmatprep.subr.mxu0 0.0
    %385 = vmatpush1.msra.mxu0 %v364
    %386 = vmatprep.subr.mxu0 0.0
    %387 = vmatpush1.msra.mxu0 0.0
    %388 = vmatprep.subr.mxu0 0.0
    %389 = vmatpush1.msra.mxu0 0.0
    %390 = vmatprep.subr.mxu0 0.0
    %391 = vmatpush1.msra.mxu0 0.0
    %392 = vmatprep.subr.mxu0 0.0
    %393 = vmatpush1.msra.mxu0 0.0
    %394 = vmatprep.subr.mxu0 0.0
    %395 = vmatpush1.msra.mxu0 0.0
    %396 = vmatprep.subr.mxu0 0.0
    %397 = vmatpush1.msra.mxu0 0.0
    %398 = vmatprep.subr.mxu0 0.0
    %399 = vmatpush1.msra.mxu0 0.0
    %400 = vmatprep.subr.mxu0 0.0
    %401 = vmatpush1.msra.mxu0 0.0
    %402 = vmatprep.subr.mxu0 0.0
    %403 = vmatpush1.msra.mxu0 0.0
    %404 = vmatprep.subr.mxu0 0.0
    %405 = vmatpush1.msra.mxu0 0.0
    %406 = vmatprep.subr.mxu0 0.0
    %407 = vmatpush1.msra.mxu0 0.0
    %408 = vmatprep.subr.mxu0 0.0
    %409 = vmatpush1.msra.mxu0 0.0
    %410 = vmatprep.subr.mxu0 0.0
    %411 = vmatpush1.msra.mxu0 0.0
    %412 = vmatprep.subr.mxu0 0.0
    %413 = vmatpush1.msra.mxu0 0.0
    %414 = vmatprep.subr.mxu0 0.0
    %415 = vmatpush1.msra.mxu0 0.0
    %416 = vmatprep.subr.mxu0 0.0
    %417 = vmatpush1.msra.mxu0 0.0
    %418 = vmatprep.subr.mxu0 0.0
    %419 = vmatpush1.msra.mxu0 0.0
    %420 = vmatprep.subr.mxu0 0.0
    %421 = vmatpush1.msra.mxu0 0.0
    %422 = vmatprep.subr.mxu0 0.0
    %423 = vmatpush1.msra.mxu0 0.0
    %424 = vmatprep.subr.mxu0 0.0
    %425 = vmatpush1.msra.mxu0 0.0
    %426 = vmatprep.subr.mxu0 0.0
    %427 = vmatpush1.msra.mxu0 0.0
    %428 = vmatprep.subr.mxu0 0.0
    %429 = vmatpush1.msra.mxu0 0.0
    %430 = vmatprep.subr.mxu0 0.0
    %431 = vmatpush1.msra.mxu0 0.0
    %432 = vmatprep.subr.mxu0 0.0
    %433 = vmatpush1.msra.mxu0 0.0
    %434 = vmatprep.subr.mxu0 0.0
    %435 = vmatpush1.msra.mxu0 0.0
    %436 = vmatprep.subr.mxu0 0.0
    %437 = vmatpush1.msra.mxu0 0.0
    %438 = vmatprep.subr.mxu0 0.0
    %439 = vmatpush1.msra.mxu0 0.0
    %440 = vmatprep.subr.mxu0 0.0
    %441 = vmatpush1.msra.mxu0 0.0
    %442 = vmatprep.mubr.f32.mxu0 0.0
    %443 = vmatmul.mubr.f32.gmra.mrb[0].mxu0 %v373
    %v444 = vpop.f32.mrb[0].mxu0
    %v445 = vadd.f32 %v370, %v444
    %v446 = vpop.f32.mrb[0].mxu0
    %447 = vmatprep.mubr.f32.mxu0 0.0
    %448 = vmatmul.mubr.f32.gmra.mrb[0].mxu0 %v376
    %v449 = vpop.f32.mrb[0].mxu0
    %v450 = vadd.f32 %v370, %v449
    %v451 = vpop.f32.mrb[0].mxu0
    %452 = vdwg.mxu0
    %v453 = vmax.f32 %v445, 0.0
    %v454 = vmax.f32 %v450, 0.0
    %v455 = vld [vmem:[#allocation11] sm:$0xff]
    %v456 = vld [vmem:[#allocation11 + $0x8] sm:$0xff]
    %v457 = vld [vmem:[#allocation11 + $0x10] sm:$0xff]
    %v458 = vld [vmem:[#allocation11 + $0x18] sm:$0xff]
    %v459 = vld [vmem:[#allocation13] sm:$0x1]
    %v461 = vlaneseq
    %v462 = vshrl.u32 %v461, 7
    %v463 = vsub.s32 0, %v462
    %v464 = vrot.slane %v459, %v463
    %v467 = vsel %vm187, %v453, 0
    %v470 = vsel %vm187, %v454, 0
    %472 = vmatprep.subr.mxu0 0.0
    %473 = vmatpush1.msra.mxu0 %v455
    %474 = vmatprep.subr.mxu0 0.0
    %475 = vmatpush1.msra.mxu0 %v456
    %476 = vmatprep.subr.mxu0 0.0
    %477 = vmatpush1.msra.mxu0 %v457
    %478 = vmatprep.subr.mxu0 0.0
    %479 = vmatpush1.msra.mxu0 %v458
    %480 = vmatprep.subr.mxu0 0.0
    %481 = vmatpush1.msra.mxu0 0.0
    %482 = vmatprep.subr.mxu0 0.0
    %483 = vmatpush1.msra.mxu0 0.0
    %484 = vmatprep.subr.mxu0 0.0
    %485 = vmatpush1.msra.mxu0 0.0
    %486 = vmatprep.subr.mxu0 0.0
    %487 = vmatpush1.msra.mxu0 0.0
    %488 = vmatprep.subr.mxu0 0.0
    %489 = vmatpush1.msra.mxu0 0.0
    %490 = vmatprep.subr.mxu0 0.0
    %491 = vmatpush1.msra.mxu0 0.0
    %492 = vmatprep.subr.mxu0 0.0
    %493 = vmatpush1.msra.mxu0 0.0
    %494 = vmatprep.subr.mxu0 0.0
    %495 = vmatpush1.msra.mxu0 0.0
    %496 = vmatprep.subr.mxu0 0.0
    %497 = vmatpush1.msra.mxu0 0.0
    %498 = vmatprep.subr.mxu0 0.0
    %499 = vmatpush1.msra.mxu0 0.0
    %500 = vmatprep.subr.mxu0 0.0
    %501 = vmatpush1.msra.mxu0 0.0
    %502 = vmatprep.subr.mxu0 0.0
    %503 = vmatpush1.msra.mxu0 0.0
    %504 = vmatprep.subr.mxu0 0.0
    %505 = vmatpush1.msra.mxu0 0.0
    %506 = vmatprep.subr.mxu0 0.0
    %507 = vmatpush1.msra.mxu0 0.0
    %508 = vmatprep.subr.mxu0 0.0
    %509 = vmatpush1.msra.mxu0 0.0
    %510 = vmatprep.subr.mxu0 0.0
    %511 = vmatpush1.msra.mxu0 0.0
    %512 = vmatprep.subr.mxu0 0.0
    %513 = vmatpush1.msra.mxu0 0.0
    %514 = vmatprep.subr.mxu0 0.0
    %515 = vmatpush1.msra.mxu0 0.0
    %516 = vmatprep.subr.mxu0 0.0
    %517 = vmatpush1.msra.mxu0 0.0
    %518 = vmatprep.subr.mxu0 0.0
    %519 = vmatpush1.msra.mxu0 0.0
    %520 = vmatprep.subr.mxu0 0.0
    %521 = vmatpush1.msra.mxu0 0.0
    %522 = vmatprep.subr.mxu0 0.0
    %523 = vmatpush1.msra.mxu0 0.0
    %524 = vmatprep.subr.mxu0 0.0
    %525 = vmatpush1.msra.mxu0 0.0
    %526 = vmatprep.subr.mxu0 0.0
    %527 = vmatpush1.msra.mxu0 0.0
    %528 = vmatprep.subr.mxu0 0.0
    %529 = vmatpush1.msra.mxu0 0.0
    %530 = vmatprep.subr.mxu0 0.0
    %531 = vmatpush1.msra.mxu0 0.0
    %532 = vmatprep.subr.mxu0 0.0
    %533 = vmatpush1.msra.mxu0 0.0
    %534 = vmatprep.subr.mxu0 0.0
    %535 = vmatpush1.msra.mxu0 0.0
    %536 = vmatprep.mubr.f32.mxu0 0.0
    %537 = vmatmul.mubr.f32.gmra.mrb[0].mxu0 %v467
    %v538 = vpop.f32.mrb[0].mxu0
    %v539 = vadd.f32 %v464, %v538
    %v540 = vpop.f32.mrb[0].mxu0
    %541 = vmatprep.mubr.f32.mxu0 0.0
    %542 = vmatmul.mubr.f32.gmra.mrb[0].mxu0 %v470
    %v543 = vpop.f32.mrb[0].mxu0
    %v544 = vadd.f32 %v464, %v543
    %v545 = vpop.f32.mrb[0].mxu0
    %546 = vdwg.mxu0
    %v547 = vadd.f32 %v357, %v539
    %v548 = vadd.f32 %v358, %v544
    %v549 = vmax.f32 %v547, 0.0
    %v550 = vmax.f32 %v548, 0.0
    %v551 = vld [vmem:[%s9] sm:$0xff]
    %v552 = vld [vmem:[%s9 + $0x8] sm:$0xff]
    %v553 = vld [vmem:[%s9 + $0x10] sm:$0xff]
    %v554 = vld [vmem:[%s9 + $0x18] sm:$0xff]
    %v555 = vld [vmem:[%s10] sm:$0x1]
    %v557 = vlaneseq
    %v558 = vshrl.u32 %v557, 7
    %v559 = vsub.s32 0, %v558
    %v560 = vrot.slane %v555, %v559
    %v563 = vsel %vm187, %v549, 0
    %v566 = vsel %vm187, %v550, 0
    %568 = vmatprep.subr.mxu0 0.0
    %569 = vmatpush1.msra.mxu0 %v551
    %570 = vmatprep.subr.mxu0 0.0
    %571 = vmatpush1.msra.mxu0 %v552
    %572 = vmatprep.subr.mxu0 0.0
    %573 = vmatpush1.msra.mxu0 %v553
    %574 = vmatprep.subr.mxu0 0.0
    %575 = vmatpush1.msra.mxu0 %v554
    %576 = vmatprep.subr.mxu0 0.0
    %577 = vmatpush1.msra.mxu0 0.0
    %578 = vmatprep.subr.mxu0 0.0
    %579 = vmatpush1.msra.mxu0 0.0
    %580 = vmatprep.subr.mxu0 0.0
    %581 = vmatpush1.msra.mxu0 0.0
    %582 = vmatprep.subr.mxu0 0.0
    %583 = vmatpush1.msra.mxu0 0.0
    %584 = vmatprep.subr.mxu0 0.0
    %585 = vmatpush1.msra.mxu0 0.0
    %586 = vmatprep.subr.mxu0 0.0
    %587 = vmatpush1.msra.mxu0 0.0
    %588 = vmatprep.subr.mxu0 0.0
    %589 = vmatpush1.msra.mxu0 0.0
    %590 = vmatprep.subr.mxu0 0.0
    %591 = vmatpush1.msra.mxu0 0.0
    %592 = vmatprep.subr.mxu0 0.0
    %593 = vmatpush1.msra.mxu0 0.0
    %594 = vmatprep.subr.mxu0 0.0
    %595 = vmatpush1.msra.mxu0 0.0
    %596 = vmatprep.subr.mxu0 0.0
    %597 = vmatpush1.msra.mxu0 0.0
    %598 = vmatprep.subr.mxu0 0.0
    %599 = vmatpush1.msra.mxu0 0.0
    %600 = vmatprep.subr.mxu0 0.0
    %601 = vmatpush1.msra.mxu0 0.0
    %602 = vmatprep.subr.mxu0 0.0
    %603 = vmatpush1.msra.mxu0 0.0
    %604 = vmatprep.subr.mxu0 0.0
    %605 = vmatpush1.msra.mxu0 0.0
    %606 = vmatprep.subr.mxu0 0.0
    %607 = vmatpush1.msra.mxu0 0.0
    %608 = vmatprep.subr.mxu0 0.0
    %609 = vmatpush1.msra.mxu0 0.0
    %610 = vmatprep.subr.mxu0 0.0
    %611 = vmatpush1.msra.mxu0 0.0
    %612 = vmatprep.subr.mxu0 0.0
    %613 = vmatpush1.msra.mxu0 0.0
    %614 = vmatprep.subr.mxu0 0.0
    %615 = vmatpush1.msra.mxu0 0.0
    %616 = vmatprep.subr.mxu0 0.0
    %617 = vmatpush1.msra.mxu0 0.0
    %618 = vmatprep.subr.mxu0 0.0
    %619 = vmatpush1.msra.mxu0 0.0
    %620 = vmatprep.subr.mxu0 0.0
    %621 = vmatpush1.msra.mxu0 0.0
    %622 = vmatprep.subr.mxu0 0.0
    %623 = vmatpush1.msra.mxu0 0.0
    %624 = vmatprep.subr.mxu0 0.0
    %625 = vmatpush1.msra.mxu0 0.0
    %626 = vmatprep.subr.mxu0 0.0
    %627 = vmatpush1.msra.mxu0 0.0
    %628 = vmatprep.subr.mxu0 0.0
    %629 = vmatpush1.msra.mxu0 0.0
    %630 = vmatprep.subr.mxu0 0.0
    %631 = vmatpush1.msra.mxu0 0.0
    %632 = vmatprep.mubr.f32.mxu0 0.0
    %633 = vmatmul.mubr.f32.gmra.mrb[0].mxu0 %v563
    %v634 = vpop.f32.mrb[0].mxu0
    %v635 = vadd.f32 %v560, %v634
    %v636 = vpop.f32.mrb[0].mxu0
    %637 = vmatprep.mubr.f32.mxu0 0.0
    %638 = vmatmul.mubr.f32.gmra.mrb[0].mxu0 %v566
    %v639 = vpop.f32.mrb[0].mxu0
    %v640 = vadd.f32 %v560, %v639
    %v641 = vpop.f32.mrb[0].mxu0
    %642 = vdwg.mxu0
    %v643 = vmax.f32 %v635, 0.0
    %v644 = vmax.f32 %v640, 0.0
    %v645 = vld [vmem:[#allocation14] sm:$0xff]
    %v646 = vld [vmem:[#allocation14 + $0x8] sm:$0xff]
    %v647 = vld [vmem:[#allocation14 + $0x10] sm:$0xff]
    %v648 = vld [vmem:[#allocation14 + $0x18] sm:$0xff]
    %v649 = vld [vmem:[%s12] sm:$0x1]
    %v651 = vlaneseq
    %v652 = vshrl.u32 %v651, 7
    %v653 = vsub.s32 0, %v652
    %v654 = vrot.slane %v649, %v653
    %v657 = vsel %vm187, %v643, 0
    %v660 = vsel %vm187, %v644, 0
    %662 = vmatprep.subr.mxu0 0.0
    %663 = vmatpush1.msra.mxu0 %v645
    %664 = vmatprep.subr.mxu0 0.0
    %665 = vmatpush1.msra.mxu0 %v646
    %666 = vmatprep.subr.mxu0 0.0
    %667 = vmatpush1.msra.mxu0 %v647
    %668 = vmatprep.subr.mxu0 0.0
    %669 = vmatpush1.msra.mxu0 %v648
    %670 = vmatprep.subr.mxu0 0.0
    %671 = vmatpush1.msra.mxu0 0.0
    %672 = vmatprep.subr.mxu0 0.0
    %673 = vmatpush1.msra.mxu0 0.0
    %674 = vmatprep.subr.mxu0 0.0
    %675 = vmatpush1.msra.mxu0 0.0
    %676 = vmatprep.subr.mxu0 0.0
    %677 = vmatpush1.msra.mxu0 0.0
    %678 = vmatprep.subr.mxu0 0.0
    %679 = vmatpush1.msra.mxu0 0.0
    %680 = vmatprep.subr.mxu0 0.0
    %681 = vmatpush1.msra.mxu0 0.0
    %682 = vmatprep.subr.mxu0 0.0
    %683 = vmatpush1.msra.mxu0 0.0
    %684 = vmatprep.subr.mxu0 0.0
    %685 = vmatpush1.msra.mxu0 0.0
    %686 = vmatprep.subr.mxu0 0.0
    %687 = vmatpush1.msra.mxu0 0.0
    %688 = vmatprep.subr.mxu0 0.0
    %689 = vmatpush1.msra.mxu0 0.0
    %690 = vmatprep.subr.mxu0 0.0
    %691 = vmatpush1.msra.mxu0 0.0
    %692 = vmatprep.subr.mxu0 0.0
    %693 = vmatpush1.msra.mxu0 0.0
    %694 = vmatprep.subr.mxu0 0.0
    %695 = vmatpush1.msra.mxu0 0.0
    %696 = vmatprep.subr.mxu0 0.0
    %697 = vmatpush1.msra.mxu0 0.0
    %698 = vmatprep.subr.mxu0 0.0
    %699 = vmatpush1.msra.mxu0 0.0
    %700 = vmatprep.subr.mxu0 0.0
    %701 = vmatpush1.msra.mxu0 0.0
    %702 = vmatprep.subr.mxu0 0.0
    %703 = vmatpush1.msra.mxu0 0.0
    %704 = vmatprep.subr.mxu0 0.0
    %705 = vmatpush1.msra.mxu0 0.0
    %706 = vmatprep.subr.mxu0 0.0
    %707 = vmatpush1.msra.mxu0 0.0
    %708 = vmatprep.subr.mxu0 0.0
    %709 = vmatpush1.msra.mxu0 0.0
    %710 = vmatprep.subr.mxu0 0.0
    %711 = vmatpush1.msra.mxu0 0.0
    %712 = vmatprep.subr.mxu0 0.0
    %713 = vmatpush1.msra.mxu0 0.0
    %714 = vmatprep.subr.mxu0 0.0
    %715 = vmatpush1.msra.mxu0 0.0
    %716 = vmatprep.subr.mxu0 0.0
    %717 = vmatpush1.msra.mxu0 0.0
    %718 = vmatprep.subr.mxu0 0.0
    %719 = vmatpush1.msra.mxu0 0.0
    %720 = vmatprep.subr.mxu0 0.0
    %721 = vmatpush1.msra.mxu0 0.0
    %722 = vmatprep.subr.mxu0 0.0
    %723 = vmatpush1.msra.mxu0 0.0
    %724 = vmatprep.subr.mxu0 0.0
    %725 = vmatpush1.msra.mxu0 0.0
    %726 = vmatprep.mubr.f32.mxu0 0.0
    %727 = vmatmul.mubr.f32.gmra.mrb[0].mxu0 %v657
    %v728 = vpop.f32.mrb[0].mxu0
    %v729 = vadd.f32 %v654, %v728
    %v730 = vpop.f32.mrb[0].mxu0
    %731 = vmatprep.mubr.f32.mxu0 0.0
    %732 = vmatmul.mubr.f32.gmra.mrb[0].mxu0 %v660
    %v733 = vpop.f32.mrb[0].mxu0
    %v734 = vadd.f32 %v654, %v733
    %v735 = vpop.f32.mrb[0].mxu0
    %736 = vdwg.mxu0
    %v737 = vadd.f32 %v547, %v729
    %v738 = vadd.f32 %v548, %v734
    %v739 = vmax.f32 %v737, 0.0
    %v740 = vmax.f32 %v738, 0.0
    %v741 = vld [vmem:[#allocation16] sm:$0xff]
    %v742 = vld [vmem:[#allocation16 + $0x8] sm:$0xff]
    %v743 = vld [vmem:[#allocation16 + $0x10] sm:$0xff]
    %v744 = vld [vmem:[#allocation16 + $0x18] sm:$0xff]
    %v745 = vld [vmem:[%s14] sm:$0x1]
    %v747 = vlaneseq
    %v748 = vshrl.u32 %v747, 7
    %v749 = vsub.s32 0, %v748
    %v750 = vrot.slane %v745, %v749
    %v753 = vsel %vm187, %v739, 0
    %v756 = vsel %vm187, %v740, 0
    %758 = vmatprep.subr.mxu0 0.0
    %759 = vmatpush1.msra.mxu0 %v741
    %760 = vmatprep.subr.mxu0 0.0
    %761 = vmatpush1.msra.mxu0 %v742
    %762 = vmatprep.subr.mxu0 0.0
    %763 = vmatpush1.msra.mxu0 %v743
    %764 = vmatprep.subr.mxu0 0.0
    %765 = vmatpush1.msra.mxu0 %v744
    %766 = vmatprep.subr.mxu0 0.0
    %767 = vmatpush1.msra.mxu0 0.0
    %768 = vmatprep.subr.mxu0 0.0
    %769 = vmatpush1.msra.mxu0 0.0
    %770 = vmatprep.subr.mxu0 0.0
    %771 = vmatpush1.msra.mxu0 0.0
    %772 = vmatprep.subr.mxu0 0.0
    %773 = vmatpush1.msra.mxu0 0.0
    %774 = vmatprep.subr.mxu0 0.0
    %775 = vmatpush1.msra.mxu0 0.0
    %776 = vmatprep.subr.mxu0 0.0
    %777 = vmatpush1.msra.mxu0 0.0
    %778 = vmatprep.subr.mxu0 0.0
    %779 = vmatpush1.msra.mxu0 0.0
    %780 = vmatprep.subr.mxu0 0.0
    %781 = vmatpush1.msra.mxu0 0.0
    %782 = vmatprep.subr.mxu0 0.0
    %783 = vmatpush1.msra.mxu0 0.0
    %784 = vmatprep.subr.mxu0 0.0
    %785 = vmatpush1.msra.mxu0 0.0
    %786 = vmatprep.subr.mxu0 0.0
    %787 = vmatpush1.msra.mxu0 0.0
    %788 = vmatprep.subr.mxu0 0.0
    %789 = vmatpush1.msra.mxu0 0.0
    %790 = vmatprep.subr.mxu0 0.0
    %791 = vmatpush1.msra.mxu0 0.0
    %792 = vmatprep.subr.mxu0 0.0
    %793 = vmatpush1.msra.mxu0 0.0
    %794 = vmatprep.subr.mxu0 0.0
    %795 = vmatpush1.msra.mxu0 0.0
    %796 = vmatprep.subr.mxu0 0.0
    %797 = vmatpush1.msra.mxu0 0.0
    %798 = vmatprep.subr.mxu0 0.0
    %799 = vmatpush1.msra.mxu0 0.0
    %800 = vmatprep.subr.mxu0 0.0
    %801 = vmatpush1.msra.mxu0 0.0
    %802 = vmatprep.subr.mxu0 0.0
    %803 = vmatpush1.msra.mxu0 0.0
    %804 = vmatprep.subr.mxu0 0.0
    %805 = vmatpush1.msra.mxu0 0.0
    %806 = vmatprep.subr.mxu0 0.0
    %807 = vmatpush1.msra.mxu0 0.0
    %808 = vmatprep.subr.mxu0 0.0
    %809 = vmatpush1.msra.mxu0 0.0
    %810 = vmatprep.subr.mxu0 0.0
    %811 = vmatpush1.msra.mxu0 0.0
    %812 = vmatprep.subr.mxu0 0.0
    %813 = vmatpush1.msra.mxu0 0.0
    %814 = vmatprep.subr.mxu0 0.0
    %815 = vmatpush1.msra.mxu0 0.0
    %816 = vmatprep.subr.mxu0 0.0
    %817 = vmatpush1.msra.mxu0 0.0
    %818 = vmatprep.subr.mxu0 0.0
    %819 = vmatpush1.msra.mxu0 0.0
    %820 = vmatprep.subr.mxu0 0.0
    %821 = vmatpush1.msra.mxu0 0.0
    %822 = vmatprep.mubr.f32.mxu0 0.0
    %823 = vmatmul.mubr.f32.gmra.mrb[0].mxu0 %v753
    %v824 = vpop.f32.mrb[0].mxu0
    %v825 = vadd.f32 %v750, %v824
    %v826 = vpop.f32.mrb[0].mxu0
    %827 = vmatprep.mubr.f32.mxu0 0.0
    %828 = vmatmul.mubr.f32.gmra.mrb[0].mxu0 %v756
    %v829 = vpop.f32.mrb[0].mxu0
    %v830 = vadd.f32 %v750, %v829
    %v831 = vpop.f32.mrb[0].mxu0
    %832 = vdwg.mxu0
    %833 = vst [vmem:[#allocation17] sm:$0xff] %v825
    %834 = vst [vmem:[#allocation17 + $0x8] sm:$0xff] %v830
    // Predicated region
    $region98: #{tpu_custom_call.1} parent=1 // pred_check
      _
    $region99: #{tpu_custom_call.1} parent=1 // pred_check_branch
      %836 = sbr.rel (0) target = $region101
    $region100: #{tpu_custom_call.1} parent=1 // pred_region
      %s838 = ssub.s32 256, 256
      %839 = vsyncadd [#allocation4], %s838
      %s840 = sshll.u32 [#allocation17], 4
      %s841 = int_to_ptr.vmem [resolvable:$true] %s840
      %846 = dma.vmem_to_hbm [thread:$0]  %s841, 256, %s15, [#allocation4], 128, 128, 8
    $region101: #{tpu_custom_call.1} parent=1 // pred_fallthru
      _
    // Predicated region
    $region102: #{tpu_custom_call.1} parent=1 // pred_check
      _
    $region103: #{tpu_custom_call.1} parent=1 // pred_check_branch
      %848 = sbr.rel (0) target = $region105
    $region104: #{tpu_custom_call.1} parent=1 // pred_region
      %849 = dma.done [#allocation4], 256
    $region105: #{tpu_custom_call.1} parent=1 // pred_fallthru
      _
    %850 = vsyncpa [#allocation3], 1
    %851 = vsyncpa [#allocation6], 1
    %852 = vsyncpa [#allocation9], 1
    %853 = vsyncpa [#allocation12], 1
    %854 = vsyncpa [#allocation15], 1
    %855 = vsyncpa [#allocation4], 1

</llo_original>
